<compile_context>
chip_gen: v7x
topology: tpu7x:2x2x1
jax: 0.10.0
libtpu: 0.0.40
codegen_flags: <defaults>
</compile_context>

<pallas_src>
import functools

import jax
import jax.numpy as jnp
from jax.experimental import pallas as pl
from jax.experimental.pallas import tpu as pltpu


def _round_up(n: int, m: int) -> int:
    return ((n + m - 1) // m) * m


def _cdiv(a: int, b: int) -> int:
    return -(-a // b)


def _select_batch_tile(B: int, max_batch_tile: int) -> int:
    """Pick a batch tile TB.

    Rules:
      * TB is a multiple of 8 (sublanes), or equals B for tiny batches.
      * TB is as large as possible (fewer grid steps => less per-step overhead)
        while keeping boundary-tile waste <= ~15% of the batch.
      * When B is large enough, keep >= 2 grid steps so the "parallel" batch
        axis can shard across both TensorCores on v7x.
    """
    if B <= 8:
        return B  # block dim equal to the full array dim is always legal
    max_tile = max(8, (max_batch_tile // 8) * 8)
    candidates = (8192, 4096, 2048, 1024, 512, 256, 128, 64, 32, 16, 8)
    tb = 8
    for cand in candidates:
        if cand > max_tile:
            continue
        steps = _cdiv(B, cand)
        waste = (steps * cand - B) / B
        if waste <= 0.15 or cand == 8:
            tb = cand
            break
    # v7x megacore: guarantee at least two parallel grid steps when B allows.
    if B >= 16 and _cdiv(B, tb) < 2:
        tb = max(8, _round_up(_cdiv(B, 2), 8))
    return tb


def _mlp_kernel(x_ref, w1_ref, b1_ref, w2_ref, b2_ref, o_ref, *, mxu_dtype):
    x = x_ref[...]
    w1 = w1_ref[...]
    w2 = w2_ref[...]
    if mxu_dtype is not None:
        # Optional bf16 MXU inputs; accumulation stays f32.
        x = x.astype(mxu_dtype)
        w1 = w1.astype(mxu_dtype)
        w2 = w2.astype(mxu_dtype)

    # fc1: (TB, In) @ (In, H), f32 accumulation on the MXU.
    h = jnp.dot(x, w1, preferred_element_type=jnp.float32)
    # Bias + ReLU on the VPU in f32.
    h = jnp.maximum(h + b1_ref[...], 0.0)
    if mxu_dtype is not None:
        h = h.astype(mxu_dtype)
    # fc2: (TB, H) @ (H, C), f32 accumulation.
    z = jnp.dot(h, w2, preferred_element_type=jnp.float32) + b2_ref[...]
    # Exact sigmoid with a single EUP transcendental (tanh); no approx recip.
    o_ref[...] = (0.5 * jnp.tanh(0.5 * z) + 0.5).astype(o_ref.dtype)


def prepare_params(w1_torch, b1_torch, w2_torch, b2_torch):
    """One-time layout conversion from PyTorch nn.Linear parameters.

    Inputs (PyTorch layout):
        w1_torch: (hidden, in)      b1_torch: (hidden,)
        w2_torch: (classes, hidden) b2_torch: (classes,)
    Returns kernel layout: w1 (in, hidden), b1 (1, hidden),
                           w2 (hidden, classes), b2 (1, classes).
    Call this ONCE at init; the per-call path (net_forward) does no layout work.
    """
    w1 = jnp.asarray(w1_torch, jnp.float32).T
    b1 = jnp.asarray(b1_torch, jnp.float32).reshape(1, -1)
    w2 = jnp.asarray(w2_torch, jnp.float32).T
    b2 = jnp.asarray(b2_torch, jnp.float32).reshape(1, -1)
    return w1, b1, w2, b2


def net_forward(x, w1, b1, w2, b2, *, max_batch_tile: int = 8192,
                use_bf16_matmul: bool = False):
    """x: (B, In); w1: (In, H); b1: (1, H); w2: (H, C); b2: (1, C) -> (B, C).

    Weights/biases must already be in kernel layout (see prepare_params).
    """
    B, In = x.shape
    assert w1.ndim == 2 and w1.shape[0] == In, (
        f"w1 must be (in_features, hidden) = ({In}, H); got {w1.shape}. "
        "Did you forget prepare_params() on PyTorch-layout weights?")
    H = w1.shape[1]
    assert b1.shape == (1, H), f"b1 must be (1, {H}); got {b1.shape}"
    assert w2.ndim == 2 and w2.shape[0] == H, (
        f"w2 must be (hidden, classes) = ({H}, C); got {w2.shape}")
    C = w2.shape[1]
    assert b2.shape == (1, C), f"b2 must be (1, {C}); got {b2.shape}"

    TB = _select_batch_tile(B, max_batch_tile)
    grid = (_cdiv(B, TB),)

    # Advisory cost for XLA's scheduler around the custom call.
    flops = 2 * B * In * H + 2 * B * H * C
    bytes_accessed = 4 * (B * In + In * H + H + H * C + C + B * C)
    cost = pl.CostEstimate(flops=flops, transcendentals=B * C,
                           bytes_accessed=bytes_accessed)

    kernel = functools.partial(
        _mlp_kernel,
        mxu_dtype=jnp.bfloat16 if use_bf16_matmul else None)

    return pl.pallas_call(
        kernel,
        out_shape=jax.ShapeDtypeStruct((B, C), jnp.float32),
        grid=grid,
        in_specs=[
            pl.BlockSpec((TB, In), lambda i: (i, 0)),  # x: tiled over batch
            pl.BlockSpec((In, H), lambda i: (0, 0)),   # w1: VMEM-resident
            pl.BlockSpec((1, H), lambda i: (0, 0)),    # b1: VMEM-resident
            pl.BlockSpec((H, C), lambda i: (0, 0)),    # w2: VMEM-resident
            pl.BlockSpec((1, C), lambda i: (0, 0)),    # b2: VMEM-resident
        ],
        out_specs=pl.BlockSpec((TB, C), lambda i: (i, 0)),
        compiler_params=pltpu.CompilerParams(
            dimension_semantics=("parallel",),
        ),
        cost_estimate=cost,
    )(x, w1, b1, w2, b2)


def reference_forward(x, w1, b1, w2, b2):
    h = jnp.maximum(
        jnp.dot(x, w1, precision=jax.lax.Precision.HIGHEST) + b1, 0.0)
    z = jnp.dot(h, w2, precision=jax.lax.Precision.HIGHEST) + b2
    return jax.nn.sigmoid(z)


if __name__ == "__main__":
    # Small shapes consistent with the module:
    # Net(input_size=32, hidden_size=32, num_classes=8), batch=8.
    batch, input_size, hidden_size, num_classes = 8, 32, 32, 8

    key = jax.random.PRNGKey(0)
    kx, k1, kb1, k2, kb2, kx2 = jax.random.split(key, 6)

    x = jax.random.normal(kx, (batch, input_size), dtype=jnp.float32)

    # Deterministic synthetic parameters in PyTorch nn.Linear layout
    # (weight: (out, in), bias: (out,)), ~nn.Linear init scale.
    s1 = input_size ** -0.5
    w1_torch = jax.random.uniform(k1, (hidden_size, input_size), jnp.float32, -s1, s1)
    b1_torch = jax.random.uniform(kb1, (hidden_size,), jnp.float32, -s1, s1)
    s2 = hidden_size ** -0.5
    w2_torch = jax.random.uniform(k2, (num_classes, hidden_size), jnp.float32, -s2, s2)
    b2_torch = jax.random.uniform(kb2, (num_classes,), jnp.float32, -s2, s2)

    # One-time layout prep (outside the per-call hot path).
    w1, b1, w2, b2 = prepare_params(w1_torch, b1_torch, w2_torch, b2_torch)

    # 1) Tiny batch (single block equal to the full batch dim).
    out = jax.block_until_ready(net_forward(x, w1, b1, w2, b2))
    ref = reference_forward(x, w1, b1, w2, b2)
    assert out.shape == (batch, num_classes)
    assert jnp.allclose(out, ref, atol=1e-4, rtol=1e-4), (
        f"max abs err {jnp.max(jnp.abs(out - ref))}")

    # 2) Multi-step grid with a partial boundary tile (no materialized padding).
    x2 = jax.random.normal(kx2, (300, input_size), dtype=jnp.float32)
    out2 = jax.block_until_ready(
        net_forward(x2, w1, b1, w2, b2, max_batch_tile=128))
    ref2 = reference_forward(x2, w1, b1, w2, b2)
    assert out2.shape == (300, num_classes)
    assert jnp.allclose(out2, ref2, atol=1e-4, rtol=1e-4), (
        f"max abs err {jnp.max(jnp.abs(out2 - ref2))}")

    print("KERNEL_OK")
</pallas_src>

<mosaic_0001>
module attributes {stable_mosaic.version = 11 : i64} {
  func.func @_mlp_kernel(%arg0: i32, %arg1: memref<8x32xf32, #tpu.memory_space<vmem>>, %arg2: memref<32x32xf32, #tpu.memory_space<vmem>>, %arg3: memref<1x32xf32, #tpu.memory_space<vmem>>, %arg4: memref<32x8xf32, #tpu.memory_space<vmem>>, %arg5: memref<1x8xf32, #tpu.memory_space<vmem>>, %arg6: memref<8x8xf32, #tpu.memory_space<vmem>>) attributes {dimension_semantics = [#tpu.dimension_semantics<parallel>], iteration_bounds = array<i64: 1>, scalar_prefetch = 0 : i64, scratch_operands = 0 : i64, tpu.core_type = #tpu.core_type<tc>, window_params = [{transform_indices = @transform_0, window_bounds = array<i64: 8, 32>}, {pipeline_mode = #tpu.pipeline_mode<synchronous>, transform_indices = @transform_1, window_bounds = array<i64: 32, 32>}, {pipeline_mode = #tpu.pipeline_mode<synchronous>, transform_indices = @transform_2, window_bounds = array<i64: 1, 32>}, {pipeline_mode = #tpu.pipeline_mode<synchronous>, transform_indices = @transform_3, window_bounds = array<i64: 32, 8>}, {pipeline_mode = #tpu.pipeline_mode<synchronous>, transform_indices = @transform_4, window_bounds = array<i64: 1, 8>}, {transform_indices = @transform_5, window_bounds = array<i64: 8, 8>}]} {
    %c0 = arith.constant 0 : index
    %c0_0 = arith.constant 0 : index
    %0 = vector.load %arg1[%c0, %c0_0] : memref<8x32xf32, #tpu.memory_space<vmem>>, vector<8x32xf32>
    %c0_1 = arith.constant 0 : index
    %c0_2 = arith.constant 0 : index
    %1 = vector.load %arg2[%c0_1, %c0_2] : memref<32x32xf32, #tpu.memory_space<vmem>>, vector<32x32xf32>
    %c0_3 = arith.constant 0 : index
    %c0_4 = arith.constant 0 : index
    %2 = vector.load %arg4[%c0_3, %c0_4] : memref<32x8xf32, #tpu.memory_space<vmem>>, vector<32x8xf32>
    %cst = arith.constant dense<0.000000e+00> : vector<8x32xf32>
    %3 = tpu.matmul %0, %1, %cst {dimension_numbers = #tpu.dot_dimension_numbers<[1], [0], [0], [1], [0, 0, 1, 1], [], []>} : vector<8x32xf32>, vector<32x32xf32>, vector<8x32xf32> -> vector<8x32xf32>
    %c0_5 = arith.constant 0 : index
    %c0_6 = arith.constant 0 : index
    %4 = vector.load %arg3[%c0_5, %c0_6] : memref<1x32xf32, #tpu.memory_space<vmem>>, vector<1x32xf32>
    %5 = vector.broadcast %4 : vector<1x32xf32> to vector<8x32xf32>
    %6 = arith.addf %3, %5 : vector<8x32xf32>
    %cst_7 = arith.constant 0.000000e+00 : f32
    %7 = vector.broadcast %cst_7 : f32 to vector<8x32xf32>
    %8 = arith.maximumf %6, %7 : vector<8x32xf32>
    %cst_8 = arith.constant dense<0.000000e+00> : vector<8x8xf32>
    %9 = tpu.matmul %8, %2, %cst_8 {dimension_numbers = #tpu.dot_dimension_numbers<[1], [0], [0], [1], [0, 0, 1, 1], [], []>} : vector<8x32xf32>, vector<32x8xf32>, vector<8x8xf32> -> vector<8x8xf32>
    %c0_9 = arith.constant 0 : index
    %c0_10 = arith.constant 0 : index
    %10 = vector.load %arg5[%c0_9, %c0_10] : memref<1x8xf32, #tpu.memory_space<vmem>>, vector<1x8xf32>
    %11 = vector.broadcast %10 : vector<1x8xf32> to vector<8x8xf32>
    %12 = arith.addf %9, %11 : vector<8x8xf32>
    %cst_11 = arith.constant 5.000000e-01 : f32
    %13 = vector.broadcast %cst_11 : f32 to vector<8x8xf32>
    %14 = arith.mulf %13, %12 : vector<8x8xf32>
    %15 = math.tanh %14 : vector<8x8xf32>
    %cst_12 = arith.constant 5.000000e-01 : f32
    %16 = vector.broadcast %cst_12 : f32 to vector<8x8xf32>
    %17 = arith.mulf %16, %15 : vector<8x8xf32>
    %cst_13 = arith.constant 5.000000e-01 : f32
    %18 = vector.broadcast %cst_13 : f32 to vector<8x8xf32>
    %19 = arith.addf %17, %18 : vector<8x8xf32>
    %c0_14 = arith.constant 0 : index
    %c0_15 = arith.constant 0 : index
    %20 = vector.load %arg6[%c0_14, %c0_15] : memref<8x8xf32, #tpu.memory_space<vmem>>, vector<8x8xf32>
    tpu.vector_store %arg6[%c0_14, %c0_15], %19 {strides = array<i32>} : memref<8x8xf32, #tpu.memory_space<vmem>>, vector<8x8xf32>,
    return
  }
  func.func @transform_0(%arg0: i32) -> (i32, i32) {
    %c0_i32 = arith.constant 0 : i32
    %c0_i32_0 = arith.constant 0 : i32
    return %arg0, %c0_i32 : i32, i32
  }
  func.func @transform_1(%arg0: i32) -> (i32, i32) {
    %c0_i32 = arith.constant 0 : i32
    %c0_i32_0 = arith.constant 0 : i32
    %c0_i32_1 = arith.constant 0 : i32
    return %c0_i32, %c0_i32_0 : i32, i32
  }
  func.func @transform_2(%arg0: i32) -> (i32, i32) {
    %c0_i32 = arith.constant 0 : i32
    %c0_i32_0 = arith.constant 0 : i32
    %c0_i32_1 = arith.constant 0 : i32
    return %c0_i32, %c0_i32_0 : i32, i32
  }
  func.func @transform_3(%arg0: i32) -> (i32, i32) {
    %c0_i32 = arith.constant 0 : i32
    %c0_i32_0 = arith.constant 0 : i32
    %c0_i32_1 = arith.constant 0 : i32
    return %c0_i32, %c0_i32_0 : i32, i32
  }
  func.func @transform_4(%arg0: i32) -> (i32, i32) {
    %c0_i32 = arith.constant 0 : i32
    %c0_i32_0 = arith.constant 0 : i32
    %c0_i32_1 = arith.constant 0 : i32
    return %c0_i32, %c0_i32_0 : i32, i32
  }
  func.func @transform_5(%arg0: i32) -> (i32, i32) {
    %c0_i32 = arith.constant 0 : i32
    %c0_i32_0 = arith.constant 0 : i32
    return %arg0, %c0_i32 : i32, i32
  }
}

</mosaic_0001>

<llo_original>
// kernel: tpu_custom_call.1
$region0: #{tpu_custom_call.1}
  #allocation0 [shape = 'u32[]', space=smem, size = 0x4, offset = 0x4, fixed_abs, tag = 'smem constant byte address 0x4 - core index']
  #allocation1 [shape = 'u32[144,128]{1,0:T(1,128)}', space=vmem, size = 0x12000, scoped, tag = 'internal scratch']
  %s0 = inlined_call_operand.vmem [shape: f32[8,32], index: 0, kind: input, shape index: {}]
  %s1 = inlined_call_operand.vmem [shape: f32[32,32], index: 1, kind: input, shape index: {}]
  %s2 = inlined_call_operand.vmem [shape: f32[1,32], index: 2, kind: input, shape index: {}]
  %s3 = inlined_call_operand.vmem [shape: f32[32,8], index: 3, kind: input, shape index: {}]
  %s4 = inlined_call_operand.vmem [shape: f32[1,8], index: 4, kind: input, shape index: {}]
  %s5 = inlined_call_operand.hbm [shape: f32[8,8], index: 5, kind: output, shape index: {}]
  %s6 = sld [smem:[#allocation0]]
  $region30: #{tpu_custom_call.1} parent=0
    _
  %s8 = ssub.s32 1, %s6
  %s9 = scalar_select 0, %s8, %s6
  $region1: #{tpu_custom_call.1} parent=0
    #allocation2 [shape = 'u8[4096]{0}', space=vmem, size = 0x1000, scoped, tag = 'output window, operand 0, single buffered']
    #allocation3 [shape = 's32[1]{0}', space=sflag, size = 0x4, scoped, tag = 'scoped memory for tpu_custom_call.1']
    %10 = vsyncpa [#allocation3], 0
    // Predicated region
    $region2: #{tpu_custom_call.1} parent=1 // pred_check
      _
    $region3: #{tpu_custom_call.1} parent=1 // pred_check_branch
      %12 = sbr.rel (0) target = $region5
    $region4: #{tpu_custom_call.1} parent=1 // pred_region
      _
    $region5: #{tpu_custom_call.1} parent=1 // pred_fallthru
      _
    // Predicated region
    $region6: #{tpu_custom_call.1} parent=1 // pred_check
      _
    $region7: #{tpu_custom_call.1} parent=1 // pred_check_branch
      %14 = sbr.rel (0) target = $region9
    $region8: #{tpu_custom_call.1} parent=1 // pred_region
      _
    $region9: #{tpu_custom_call.1} parent=1 // pred_fallthru
      _
    // Predicated region
    $region10: #{tpu_custom_call.1} parent=1 // pred_check
      _
    $region11: #{tpu_custom_call.1} parent=1 // pred_check_branch
      %16 = sbr.rel (0) target = $region13
    $region12: #{tpu_custom_call.1} parent=1 // pred_region
      _
    $region13: #{tpu_custom_call.1} parent=1 // pred_fallthru
      _
    // Predicated region
    $region14: #{tpu_custom_call.1} parent=1 // pred_check
      _
    $region15: #{tpu_custom_call.1} parent=1 // pred_check_branch
      %18 = sbr.rel (0) target = $region17
    $region16: #{tpu_custom_call.1} parent=1 // pred_region
      _
    $region17: #{tpu_custom_call.1} parent=1 // pred_fallthru
      _
    // Predicated region
    $region18: #{tpu_custom_call.1} parent=1 // pred_check
      _
    $region19: #{tpu_custom_call.1} parent=1 // pred_check_branch
      %20 = sbr.rel (0) target = $region21
    $region20: #{tpu_custom_call.1} parent=1 // pred_region
      _
    $region21: #{tpu_custom_call.1} parent=1 // pred_fallthru
      _
    %v21 = vld [vmem:[%s0] sm:$0xff]
    %v22 = vld [vmem:[%s1] sm:$0xff]
    %v23 = vld [vmem:[%s1 + $0x8] sm:$0xff]
    %v24 = vld [vmem:[%s1 + $0x10] sm:$0xff]
    %v25 = vld [vmem:[%s1 + $0x18] sm:$0xff]
    %v26 = vld [vmem:[%s3] sm:$0xff]
    %v27 = vld [vmem:[%s3 + $0x8] sm:$0xff]
    %v28 = vld [vmem:[%s3 + $0x10] sm:$0xff]
    %v29 = vld [vmem:[%s3 + $0x18] sm:$0xff]
    %v30 = vld [vmem:[%s2] sm:$0x1]
    %v32 = vlaneseq
    %v33 = vshrl.u32 %v32, 7
    %v34 = vsub.s32 0, %v33
    %v35 = vrot.slane %v30, %v34
    %vm37 = vcmask 261120
    %v39 = vsel %vm37, %v21, 0
    %41 = vmatprep.subr.mxu0 0.0
    %42 = vmatpush1.msra.mxu0 %v22
    %43 = vmatprep.subr.mxu0 0.0
    %44 = vmatpush1.msra.mxu0 %v23
    %45 = vmatprep.subr.mxu0 0.0
    %46 = vmatpush1.msra.mxu0 %v24
    %47 = vmatprep.subr.mxu0 0.0
    %48 = vmatpush1.msra.mxu0 %v25
    %49 = vmatprep.subr.mxu0 0.0
    %50 = vmatpush1.msra.mxu0 0.0
    %51 = vmatprep.subr.mxu0 0.0
    %52 = vmatpush1.msra.mxu0 0.0
    %53 = vmatprep.subr.mxu0 0.0
    %54 = vmatpush1.msra.mxu0 0.0
    %55 = vmatprep.subr.mxu0 0.0
    %56 = vmatpush1.msra.mxu0 0.0
    %57 = vmatprep.subr.mxu0 0.0
    %58 = vmatpush1.msra.mxu0 0.0
    %59 = vmatprep.subr.mxu0 0.0
    %60 = vmatpush1.msra.mxu0 0.0
    %61 = vmatprep.subr.mxu0 0.0
    %62 = vmatpush1.msra.mxu0 0.0
    %63 = vmatprep.subr.mxu0 0.0
    %64 = vmatpush1.msra.mxu0 0.0
    %65 = vmatprep.subr.mxu0 0.0
    %66 = vmatpush1.msra.mxu0 0.0
    %67 = vmatprep.subr.mxu0 0.0
    %68 = vmatpush1.msra.mxu0 0.0
    %69 = vmatprep.subr.mxu0 0.0
    %70 = vmatpush1.msra.mxu0 0.0
    %71 = vmatprep.subr.mxu0 0.0
    %72 = vmatpush1.msra.mxu0 0.0
    %73 = vmatprep.subr.mxu0 0.0
    %74 = vmatpush1.msra.mxu0 0.0
    %75 = vmatprep.subr.mxu0 0.0
    %76 = vmatpush1.msra.mxu0 0.0
    %77 = vmatprep.subr.mxu0 0.0
    %78 = vmatpush1.msra.mxu0 0.0
    %79 = vmatprep.subr.mxu0 0.0
    %80 = vmatpush1.msra.mxu0 0.0
    %81 = vmatprep.subr.mxu0 0.0
    %82 = vmatpush1.msra.mxu0 0.0
    %83 = vmatprep.subr.mxu0 0.0
    %84 = vmatpush1.msra.mxu0 0.0
    %85 = vmatprep.subr.mxu0 0.0
    %86 = vmatpush1.msra.mxu0 0.0
    %87 = vmatprep.subr.mxu0 0.0
    %88 = vmatpush1.msra.mxu0 0.0
    %89 = vmatprep.subr.mxu0 0.0
    %90 = vmatpush1.msra.mxu0 0.0
    %91 = vmatprep.subr.mxu0 0.0
    %92 = vmatpush1.msra.mxu0 0.0
    %93 = vmatprep.subr.mxu0 0.0
    %94 = vmatpush1.msra.mxu0 0.0
    %95 = vmatprep.subr.mxu0 0.0
    %96 = vmatpush1.msra.mxu0 0.0
    %97 = vmatprep.subr.mxu0 0.0
    %98 = vmatpush1.msra.mxu0 0.0
    %99 = vmatprep.subr.mxu0 0.0
    %100 = vmatpush1.msra.mxu0 0.0
    %101 = vmatprep.subr.mxu0 0.0
    %102 = vmatpush1.msra.mxu0 0.0
    %103 = vmatprep.subr.mxu0 0.0
    %104 = vmatpush1.msra.mxu0 0.0
    %105 = vmatprep.mubr.f32.mxu0 0.0
    %106 = vmatmul.mubr.f32.gmra.mrb[0].mxu0 %v39
    %v107 = vpop.f32.mrb[0].mxu0
    %v108 = vadd.f32 %v35, %v107
    %v109 = vpop.f32.mrb[0].mxu0
    %110 = vdwg.mxu0
    %v111 = vmax.f32 %v108, 0.0
    %v112 = vld [vmem:[%s4] sm:$0x1]
    %v114 = vlaneseq
    %v115 = vshrl.u32 %v114, 7
    %v116 = vsub.s32 0, %v115
    %v117 = vrot.slane %v112, %v116
    %v120 = vsel %vm37, %v111, 0
    %122 = vmatprep.subr.mxu0 0.0
    %123 = vmatpush1.msra.mxu0 %v26
    %124 = vmatprep.subr.mxu0 0.0
    %125 = vmatpush1.msra.mxu0 %v27
    %126 = vmatprep.subr.mxu0 0.0
    %127 = vmatpush1.msra.mxu0 %v28
    %128 = vmatprep.subr.mxu0 0.0
    %129 = vmatpush1.msra.mxu0 %v29
    %130 = vmatprep.subr.mxu0 0.0
    %131 = vmatpush1.msra.mxu0 0.0
    %132 = vmatprep.subr.mxu0 0.0
    %133 = vmatpush1.msra.mxu0 0.0
    %134 = vmatprep.subr.mxu0 0.0
    %135 = vmatpush1.msra.mxu0 0.0
    %136 = vmatprep.subr.mxu0 0.0
    %137 = vmatpush1.msra.mxu0 0.0
    %138 = vmatprep.subr.mxu0 0.0
    %139 = vmatpush1.msra.mxu0 0.0
    %140 = vmatprep.subr.mxu0 0.0
    %141 = vmatpush1.msra.mxu0 0.0
    %142 = vmatprep.subr.mxu0 0.0
    %143 = vmatpush1.msra.mxu0 0.0
    %144 = vmatprep.subr.mxu0 0.0
    %145 = vmatpush1.msra.mxu0 0.0
    %146 = vmatprep.subr.mxu0 0.0
    %147 = vmatpush1.msra.mxu0 0.0
    %148 = vmatprep.subr.mxu0 0.0
    %149 = vmatpush1.msra.mxu0 0.0
    %150 = vmatprep.subr.mxu0 0.0
    %151 = vmatpush1.msra.mxu0 0.0
    %152 = vmatprep.subr.mxu0 0.0
    %153 = vmatpush1.msra.mxu0 0.0
    %154 = vmatprep.subr.mxu0 0.0
    %155 = vmatpush1.msra.mxu0 0.0
    %156 = vmatprep.subr.mxu0 0.0
    %157 = vmatpush1.msra.mxu0 0.0
    %158 = vmatprep.subr.mxu0 0.0
    %159 = vmatpush1.msra.mxu0 0.0
    %160 = vmatprep.subr.mxu0 0.0
    %161 = vmatpush1.msra.mxu0 0.0
    %162 = vmatprep.subr.mxu0 0.0
    %163 = vmatpush1.msra.mxu0 0.0
    %164 = vmatprep.subr.mxu0 0.0
    %165 = vmatpush1.msra.mxu0 0.0
    %166 = vmatprep.subr.mxu0 0.0
    %167 = vmatpush1.msra.mxu0 0.0
    %168 = vmatprep.subr.mxu0 0.0
    %169 = vmatpush1.msra.mxu0 0.0
    %170 = vmatprep.subr.mxu0 0.0
    %171 = vmatpush1.msra.mxu0 0.0
    %172 = vmatprep.subr.mxu0 0.0
    %173 = vmatpush1.msra.mxu0 0.0
    %174 = vmatprep.subr.mxu0 0.0
    %175 = vmatpush1.msra.mxu0 0.0
    %176 = vmatprep.subr.mxu0 0.0
    %177 = vmatpush1.msra.mxu0 0.0
    %178 = vmatprep.subr.mxu0 0.0
    %179 = vmatpush1.msra.mxu0 0.0
    %180 = vmatprep.subr.mxu0 0.0
    %181 = vmatpush1.msra.mxu0 0.0
    %182 = vmatprep.subr.mxu0 0.0
    %183 = vmatpush1.msra.mxu0 0.0
    %184 = vmatprep.subr.mxu0 0.0
    %185 = vmatpush1.msra.mxu0 0.0
    %186 = vmatprep.mubr.f32.mxu0 0.0
    %187 = vmatmul.mubr.f32.gmra.mrb[0].mxu0 %v120
    %v188 = vpop.f32.mrb[0].mxu0
    %v189 = vadd.f32 %v117, %v188
    %v190 = vpop.f32.mrb[0].mxu0
    %191 = vdwg.mxu0
    %v192 = vmul.f32 %v189, 0.5
    %v193 = vtanh.pop %v192
    %v194 = vmul.f32 %v193, 0.5
    %v195 = vadd.f32 %v194, 0.5
    %vm196 = vcmask 64512
    %197 = vst.msk [vmem:[#allocation2] sm:$0xff] %vm196, %v195
    // Predicated region
    $region22: #{tpu_custom_call.1} parent=1 // pred_check
      _
    $region23: #{tpu_custom_call.1} parent=1 // pred_check_branch
      %199 = sbr.rel (0) target = $region25
    $region24: #{tpu_custom_call.1} parent=1 // pred_region
      %s201 = ssub.s32 128, 128
      %202 = vsyncadd [#allocation3], %s201
      %s204 = sshll.u32 [#allocation2], 4
      %s205 = int_to_ptr.vmem [resolvable:$true] %s204
      %207 = dma.vmem_to_hbm [thread:$0]  %s205, 128, %s5, [#allocation3]
    $region25: #{tpu_custom_call.1} parent=1 // pred_fallthru
      _
    // Predicated region
    $region26: #{tpu_custom_call.1} parent=1 // pred_check
      _
    $region27: #{tpu_custom_call.1} parent=1 // pred_check_branch
      %209 = sbr.rel (0) target = $region29
    $region28: #{tpu_custom_call.1} parent=1 // pred_region
      %210 = dma.done [#allocation3], 128
    $region29: #{tpu_custom_call.1} parent=1 // pred_fallthru
      _
    %211 = vsyncpa [#allocation3], 1

</llo_original>
